<compile_context>
chip_gen: v5e
topology: v5e:2x2
jax: 0.10.0
libtpu: 0.0.40
codegen_flags: <defaults>
</compile_context>

<pallas_src>
import functools
import math

import jax
import jax.numpy as jnp
from jax.experimental import pallas as pl
from jax.experimental.pallas import tpu as pltpu


def _round_up(x, m):
    return ((x + m - 1) // m) * m


# ---------------------------------------------------------------------------
# Kernels
# ---------------------------------------------------------------------------

def _fused_sum_kernel(x_ref, w_ref, b_ref, o_ref, *, matmul_dtype):
    """mean/sum path: neighbor reduction fused into the matmul.

    x_ref: (TM, D*K)   w_ref: (D*K, O_pad) (already 1/K-scaled for mean)
    b_ref: (1, O_pad)  o_ref: (TM, O_pad)
    """
    x = x_ref[...].astype(matmul_dtype)
    w = w_ref[...].astype(matmul_dtype)
    hidden = jnp.dot(x, w, preferred_element_type=jnp.float32)   # MXU
    hidden = hidden + b_ref[...]                                  # (1, O_pad) bcast
    o_ref[...] = hidden.astype(o_ref.dtype)


def _max_kernel(x_ref, w_ref, b_ref, o_ref, *, matmul_dtype):
    """max path: unrolled elementwise maximum over the (small, static) K axis.

    x_ref: (TM, K, D)  w_ref: (D, O_pad)  b_ref: (1, O_pad)  o_ref: (TM, O_pad)
    """
    x = x_ref[...]                       # (TM, K, D), D on the lane axis
    k_total = x.shape[1]
    aggr = x[:, 0, :]
    for k in range(1, k_total):          # unrolled VALU maximum chain (K is static)
        aggr = jnp.maximum(aggr, x[:, k, :])
    hidden = jnp.dot(aggr.astype(matmul_dtype),
                     w_ref[...].astype(matmul_dtype),
                     preferred_element_type=jnp.float32)          # MXU
    hidden = hidden + b_ref[...]
    o_ref[...] = hidden.astype(o_ref.dtype)


# ---------------------------------------------------------------------------
# Wrapper
# ---------------------------------------------------------------------------

def neighbor_aggregator(neighbor_feature, weight, bias=None,
                        aggr_method="mean", use_bias=False,
                        tile_m=256, matmul_dtype=jnp.float32):
    """neighbor_feature: (B, N, D, K); weight: (D, O); bias: (O,) or None.

    Returns (B, N, O).  `tile_m` is the row tile (tune per generation: ~128 on
    v5e, 256+ on v6e/v7x); `matmul_dtype=jnp.bfloat16` enables the bf16 MXU path
    on v6e/v7x.
    """
    B, N, D, K = neighbor_feature.shape
    D_w, O = weight.shape
    assert D_w == D, (D_w, D)
    M = B * N

    # Lane-dense output: pad O up to a multiple of 128 (sliced off afterwards).
    O_pad = _round_up(O, 128)
    # Row tile: multiple of 8 sublanes, capped so tiny problems still work.
    tm = min(tile_m, _round_up(M, 8))
    M_pad = _round_up(M, tm)

    w_pad = jnp.pad(weight.astype(jnp.float32), ((0, 0), (0, O_pad - O)))

    # Bias as a real kernel operand (jit-safe); zeros when unused.
    if use_bias:
        b_arr = jnp.asarray(bias, jnp.float32).reshape(1, O)
    else:
        b_arr = jnp.zeros((1, O), jnp.float32)
    b_arr = jnp.pad(b_arr, ((0, 0), (0, O_pad - O)))

    if aggr_method in ("mean", "sum"):
        # Flatten (M, D, K) -> (M, D*K); element order d*K + k matches
        # jnp.repeat(weight, K, axis=0) row order, so the matmul performs the
        # neighbor sum as part of the contraction.
        x = neighbor_feature.reshape(M, D * K)
        if M_pad > M:
            x = jnp.pad(x, ((0, M_pad - M), (0, 0)))
        w_rep = jnp.repeat(w_pad, K, axis=0)              # (D*K, O_pad)
        if aggr_method == "mean":
            w_rep = w_rep * (1.0 / K)
        kernel = functools.partial(_fused_sum_kernel, matmul_dtype=matmul_dtype)
        w_arg = w_rep
        x_spec = pl.BlockSpec((tm, D * K), lambda i: (i, 0))
        w_spec = pl.BlockSpec((D * K, O_pad), lambda i: (0, 0))
    elif aggr_method == "max":
        # TODO(synk): torch's .max(dim=3) returns (values, indices); the reference
        # module would actually fail at the matmul -- we use the values (intent).
        # Put D on the lane axis: (M, K, D).
        x = jnp.transpose(neighbor_feature.reshape(M, D, K), (0, 2, 1))
        if M_pad > M:
            x = jnp.pad(x, ((0, M_pad - M), (0, 0), (0, 0)))
        kernel = functools.partial(_max_kernel, matmul_dtype=matmul_dtype)
        w_arg = w_pad
        x_spec = pl.BlockSpec((tm, K, D), lambda i: (i, 0, 0))
        w_spec = pl.BlockSpec((D, O_pad), lambda i: (0, 0))
    else:
        raise ValueError(
            "Unknown aggr type, expected sum, max, or mean, but got {}".format(aggr_method))

    b_spec = pl.BlockSpec((1, O_pad), lambda i: (0, 0))
    out_spec = pl.BlockSpec((tm, O_pad), lambda i: (i, 0))

    out = pl.pallas_call(
        kernel,
        out_shape=jax.ShapeDtypeStruct((M_pad, O_pad), neighbor_feature.dtype),
        grid_spec=pltpu.PrefetchScalarGridSpec(
            num_scalar_prefetch=0,
            grid=(M_pad // tm,),
            in_specs=[x_spec, w_spec, b_spec],
            out_specs=out_spec,
        ),
        compiler_params=pltpu.CompilerParams(
            dimension_semantics=("parallel",),       # shard row tiles across TCs (v7x)
            vmem_limit_bytes=32 * 1024 * 1024,       # safe on v5e/v6e/v7x
        ),
    )(x, w_arg, b_arr)

    return out[:M, :O].reshape(B, N, O)


# ---------------------------------------------------------------------------
# Parameter init + pure-JAX reference
# ---------------------------------------------------------------------------

def init_params(key, input_dim, output_dim, use_bias=False):
    """Replica of torch kaiming_uniform_ on a (input_dim, output_dim) parameter.
    NOTE(intentional): torch computes fan_in = size(1) = output_dim for this
    layout; we reproduce that quirk on purpose -- do not "fix" it."""
    fan_in = output_dim
    gain = math.sqrt(2.0)
    bound = gain * math.sqrt(3.0 / fan_in)
    weight = jax.random.uniform(key, (input_dim, output_dim), jnp.float32,
                                minval=-bound, maxval=bound)
    bias = jnp.zeros((output_dim,), jnp.float32) if use_bias else None
    return weight, bias


def _reference(neighbor_feature, weight, bias, aggr_method, use_bias):
    if aggr_method == "mean":
        aggr = neighbor_feature.mean(axis=3)
    elif aggr_method == "sum":
        aggr = neighbor_feature.sum(axis=3)
    else:
        aggr = neighbor_feature.max(axis=3)
    out = jnp.matmul(aggr, weight)
    if use_bias:
        out = out + bias
    return out


if __name__ == "__main__":
    # Small shapes: batch=2, nodes=8, input_dim=32, num_neighbors=4, output_dim=16
    B, N, D, K, O = 2, 8, 32, 4, 16
    key = jax.random.PRNGKey(0)
    k_x, k_w, k_b = jax.random.split(key, 3)

    neighbor_feature = jax.random.normal(k_x, (B, N, D, K), jnp.float32)

    ok = True
    for aggr_method, use_bias in (("mean", False), ("sum", True), ("max", False)):
        weight, bias = init_params(k_w, D, O, use_bias=use_bias)
        if use_bias:
            bias = jax.random.normal(k_b, (O,), jnp.float32)  # exercise the bias path

        out = neighbor_aggregator(neighbor_feature, weight, bias,
                                  aggr_method=aggr_method, use_bias=use_bias)
        out = jax.block_until_ready(out)
        ref = _reference(neighbor_feature, weight, bias, aggr_method, use_bias)

        assert out.shape == (B, N, O), out.shape
        err = float(jnp.max(jnp.abs(out - ref)))
        if not jnp.allclose(out, ref, atol=1e-4, rtol=1e-4):
            print("MISMATCH", aggr_method, use_bias, err)
            ok = False

    # bf16 MXU path (recommended on v6e/v7x), looser tolerance.
    weight, bias = init_params(k_w, D, O, use_bias=False)
    out_bf16 = neighbor_aggregator(neighbor_feature, weight, None,
                                   aggr_method="mean", use_bias=False,
                                   matmul_dtype=jnp.bfloat16)
    out_bf16 = jax.block_until_ready(out_bf16)
    ref = _reference(neighbor_feature, weight, None, "mean", False)
    if not jnp.allclose(out_bf16, ref, atol=5e-2, rtol=5e-2):
        print("MISMATCH bf16", float(jnp.max(jnp.abs(out_bf16 - ref))))
        ok = False

    if ok:
        print("KERNEL_OK")
</pallas_src>

<mosaic_0001>
module attributes {stable_mosaic.version = 11 : i64} {
  func.func @_fused_sum_kernel(%arg0: i32, %arg1: memref<16x128xf32, #tpu.memory_space<vmem>>, %arg2: memref<128x128xf32, #tpu.memory_space<vmem>>, %arg3: memref<1x128xf32, #tpu.memory_space<vmem>>, %arg4: memref<16x128xf32, #tpu.memory_space<vmem>>) attributes {dimension_semantics = [#tpu.dimension_semantics<parallel>], iteration_bounds = array<i64: 1>, scalar_prefetch = 0 : i64, scratch_operands = 0 : i64, tpu.core_type = #tpu.core_type<tc>, window_params = [{transform_indices = @transform_0, window_bounds = array<i64: 16, 128>}, {pipeline_mode = #tpu.pipeline_mode<synchronous>, transform_indices = @transform_1, window_bounds = array<i64: 128, 128>}, {pipeline_mode = #tpu.pipeline_mode<synchronous>, transform_indices = @transform_2, window_bounds = array<i64: 1, 128>}, {transform_indices = @transform_3, window_bounds = array<i64: 16, 128>}]} {
    %c0 = arith.constant 0 : index
    %c0_0 = arith.constant 0 : index
    %0 = vector.load %arg1[%c0, %c0_0] : memref<16x128xf32, #tpu.memory_space<vmem>>, vector<16x128xf32>
    %c0_1 = arith.constant 0 : index
    %c0_2 = arith.constant 0 : index
    %1 = vector.load %arg2[%c0_1, %c0_2] : memref<128x128xf32, #tpu.memory_space<vmem>>, vector<128x128xf32>
    %cst = arith.constant dense<0.000000e+00> : vector<16x128xf32>
    %2 = tpu.matmul %0, %1, %cst {dimension_numbers = #tpu.dot_dimension_numbers<[1], [0], [0], [1], [0, 0, 1, 1], [], []>} : vector<16x128xf32>, vector<128x128xf32>, vector<16x128xf32> -> vector<16x128xf32>
    %c0_3 = arith.constant 0 : index
    %c0_4 = arith.constant 0 : index
    %3 = vector.load %arg3[%c0_3, %c0_4] : memref<1x128xf32, #tpu.memory_space<vmem>>, vector<1x128xf32>
    %4 = vector.broadcast %3 : vector<1x128xf32> to vector<16x128xf32>
    %5 = arith.addf %2, %4 : vector<16x128xf32>
    %c0_5 = arith.constant 0 : index
    %c0_6 = arith.constant 0 : index
    %6 = vector.load %arg4[%c0_5, %c0_6] : memref<16x128xf32, #tpu.memory_space<vmem>>, vector<16x128xf32>
    tpu.vector_store %arg4[%c0_5, %c0_6], %5 {strides = array<i32>} : memref<16x128xf32, #tpu.memory_space<vmem>>, vector<16x128xf32>,
    return
  }
  func.func @transform_0(%arg0: i32) -> (i32, i32) {
    %c0_i32 = arith.constant 0 : i32
    %c0_i32_0 = arith.constant 0 : i32
    return %arg0, %c0_i32 : i32, i32
  }
  func.func @transform_1(%arg0: i32) -> (i32, i32) {
    %c0_i32 = arith.constant 0 : i32
    %c0_i32_0 = arith.constant 0 : i32
    %c0_i32_1 = arith.constant 0 : i32
    return %c0_i32, %c0_i32_0 : i32, i32
  }
  func.func @transform_2(%arg0: i32) -> (i32, i32) {
    %c0_i32 = arith.constant 0 : i32
    %c0_i32_0 = arith.constant 0 : i32
    %c0_i32_1 = arith.constant 0 : i32
    return %c0_i32, %c0_i32_0 : i32, i32
  }
  func.func @transform_3(%arg0: i32) -> (i32, i32) {
    %c0_i32 = arith.constant 0 : i32
    %c0_i32_0 = arith.constant 0 : i32
    return %arg0, %c0_i32 : i32, i32
  }
}

</mosaic_0001>

<llo_original>
// kernel: tpu_custom_call.1
$region0: #{tpu_custom_call.1}
  #allocation0 [shape = 'u32[]', space=smem, size = 0x4, offset = 0x4, fixed_abs, tag = 'smem constant byte address 0x4 - core index']
  #allocation1 [shape = 'u32[72,128]{1,0:T(1,128)}', space=vmem, size = 0x9000, scoped, tag = 'internal scratch']
  %s0 = inlined_call_operand.hbm [shape: f32[16,128], index: 0, kind: input, shape index: {}]
  %s1 = inlined_call_operand.hbm [shape: f32[128,128], index: 1, kind: input, shape index: {}]
  %s2 = inlined_call_operand.vmem [shape: f32[1,128], index: 2, kind: input, shape index: {}]
  %s3 = inlined_call_operand.hbm [shape: f32[16,128], index: 3, kind: output, shape index: {}]
  %s4 = sld [smem:[#allocation0]]
  $region30: #{tpu_custom_call.1} parent=0
    _
  %s6 = ssub.s32 1, %s4
  %s7 = scalar_select 0, %s6, %s4
  $region1: #{tpu_custom_call.1} parent=0
    #allocation2 [shape = 'u8[8192]{0}', space=vmem, size = 0x2000, scoped, tag = 'input window, operand 0, single buffered']
    #allocation3 [shape = 's32[1]{0}', space=sflag, size = 0x4, scoped, tag = 'scoped memory for tpu_custom_call.1']
    #allocation4 [shape = 's32[1]{0}', space=sflag, size = 0x4, scoped, tag = 'scoped memory for tpu_custom_call.1']
    #allocation5 [shape = 'u8[65536]{0}', space=vmem, size = 0x10000, scoped, tag = 'input window, operand 1, single buffered']
    #allocation6 [shape = 's32[1]{0}', space=sflag, size = 0x4, scoped, tag = 'scoped memory for tpu_custom_call.1']
    #allocation7 [shape = 'u8[8192]{0}', space=vmem, size = 0x2000, scoped, tag = 'output window, operand 0, single buffered']
    %8 = vsyncpa [#allocation3], 0
    %9 = vsyncpa [#allocation6], 0
    %10 = vsyncpa [#allocation4], 0
    // Predicated region
    $region2: #{tpu_custom_call.1} parent=1 // pred_check
      _
    $region3: #{tpu_custom_call.1} parent=1 // pred_check_branch
      %12 = sbr.rel (0) target = $region5
    $region4: #{tpu_custom_call.1} parent=1 // pred_region
      %14 = vsyncadd [#allocation3], 0
      %s15 = sshll.u32 %s0, 4
      %s16 = int_to_ptr.hbm [resolvable:$true] %s15
      %s17 = sshll.u32 [#allocation2], 4
      %s18 = int_to_ptr.vmem [resolvable:$true] %s17
      %23 = dma.hbm_to_vmem [thread:$0]  %s16, 256, %s18, [#allocation3], 128, 128, 8
    $region5: #{tpu_custom_call.1} parent=1 // pred_fallthru
      _
    // Predicated region
    $region6: #{tpu_custom_call.1} parent=1 // pred_check
      _
    $region7: #{tpu_custom_call.1} parent=1 // pred_check_branch
      %25 = sbr.rel (0) target = $region9
    $region8: #{tpu_custom_call.1} parent=1 // pred_region
      %27 = vsyncadd [#allocation6], 0
      %s28 = sshll.u32 %s1, 4
      %s29 = int_to_ptr.hbm [resolvable:$true] %s28
      %s30 = sshll.u32 [#allocation5], 4
      %s31 = int_to_ptr.vmem [resolvable:$true] %s30
      %36 = dma.hbm_to_vmem [thread:$0]  %s29, 2048, %s31, [#allocation6], 128, 128, 8
    $region9: #{tpu_custom_call.1} parent=1 // pred_fallthru
      _
    // Predicated region
    $region10: #{tpu_custom_call.1} parent=1 // pred_check
      _
    $region11: #{tpu_custom_call.1} parent=1 // pred_check_branch
      %38 = sbr.rel (0) target = $region13
    $region12: #{tpu_custom_call.1} parent=1 // pred_region
      _
    $region13: #{tpu_custom_call.1} parent=1 // pred_fallthru
      _
    // Predicated region
    $region14: #{tpu_custom_call.1} parent=1 // pred_check
      _
    $region15: #{tpu_custom_call.1} parent=1 // pred_check_branch
      %40 = sbr.rel (0) target = $region17
    $region16: #{tpu_custom_call.1} parent=1 // pred_region
      %42 = dma.done [#allocation3], 256
    $region17: #{tpu_custom_call.1} parent=1 // pred_fallthru
      _
    // Predicated region
    $region18: #{tpu_custom_call.1} parent=1 // pred_check
      _
    $region19: #{tpu_custom_call.1} parent=1 // pred_check_branch
      %44 = sbr.rel (0) target = $region21
    $region20: #{tpu_custom_call.1} parent=1 // pred_region
      %46 = dma.done [#allocation6], 2048
    $region21: #{tpu_custom_call.1} parent=1 // pred_fallthru
      _
    %v47 = vld [vmem:[#allocation2] sm:$0xff]
    %v48 = vld [vmem:[#allocation2 + $0x8] sm:$0xff]
    %v49 = vld [vmem:[#allocation5] sm:$0xff]
    %v50 = vld [vmem:[#allocation5 + $0x8] sm:$0xff]
    %v51 = vld [vmem:[#allocation5 + $0x10] sm:$0xff]
    %v52 = vld [vmem:[#allocation5 + $0x18] sm:$0xff]
    %v53 = vld [vmem:[#allocation5 + $0x20] sm:$0xff]
    %v54 = vld [vmem:[#allocation5 + $0x28] sm:$0xff]
    %v55 = vld [vmem:[#allocation5 + $0x30] sm:$0xff]
    %v56 = vld [vmem:[#allocation5 + $0x38] sm:$0xff]
    %v57 = vld [vmem:[#allocation5 + $0x40] sm:$0xff]
    %v58 = vld [vmem:[#allocation5 + $0x48] sm:$0xff]
    %v59 = vld [vmem:[#allocation5 + $0x50] sm:$0xff]
    %v60 = vld [vmem:[#allocation5 + $0x58] sm:$0xff]
    %v61 = vld [vmem:[#allocation5 + $0x60] sm:$0xff]
    %v62 = vld [vmem:[#allocation5 + $0x68] sm:$0xff]
    %v63 = vld [vmem:[#allocation5 + $0x70] sm:$0xff]
    %v64 = vld [vmem:[#allocation5 + $0x78] sm:$0xff]
    %v65 = vld [vmem:[%s2] sm:$0x1]
    %v67 = vperm.slane %v65, 0
    %69 = vmatpush.msra.mxu0 %v64
    %70 = vmatpush.msra.mxu0 %v63
    %71 = vmatpush.msra.mxu0 %v62
    %72 = vmatpush.msra.mxu0 %v61
    %73 = vmatpush.msra.mxu0 %v60
    %74 = vmatpush.msra.mxu0 %v59
    %75 = vmatpush.msra.mxu0 %v58
    %76 = vmatpush.msra.mxu0 %v57
    %77 = vmatpush.msra.mxu0 %v56
    %78 = vmatpush.msra.mxu0 %v55
    %79 = vmatpush.msra.mxu0 %v54
    %80 = vmatpush.msra.mxu0 %v53
    %81 = vmatpush.msra.mxu0 %v52
    %82 = vmatpush.msra.mxu0 %v51
    %83 = vmatpush.msra.mxu0 %v50
    %84 = vmatpush.msra.mxu0 %v49
    %85 = vmatmul.f32.gmra.mxu0 %v47
    %v86 = vpop.f32.mrf.mxu0
    %v87 = vadd.f32 %v67, %v86
    %88 = vmatmul.f32.gmra.mxu0 %v48
    %v89 = vpop.f32.mrf.mxu0
    %v90 = vadd.f32 %v67, %v89
    %91 = vdwg.mxu0
    %92 = vst [vmem:[#allocation7] sm:$0xff] %v87
    %93 = vst [vmem:[#allocation7 + $0x8] sm:$0xff] %v90
    // Predicated region
    $region22: #{tpu_custom_call.1} parent=1 // pred_check
      _
    $region23: #{tpu_custom_call.1} parent=1 // pred_check_branch
      %95 = sbr.rel (0) target = $region25
    $region24: #{tpu_custom_call.1} parent=1 // pred_region
      %97 = vsyncadd [#allocation4], 0
      %s98 = sshll.u32 [#allocation7], 4
      %s99 = int_to_ptr.vmem [resolvable:$true] %s98
      %s100 = sshll.u32 %s3, 4
      %s101 = int_to_ptr.hbm [resolvable:$true] %s100
      %106 = dma.vmem_to_hbm [thread:$0]  %s99, 256, %s101, [#allocation4], 128, 128, 8
    $region25: #{tpu_custom_call.1} parent=1 // pred_fallthru
      _
    // Predicated region
    $region26: #{tpu_custom_call.1} parent=1 // pred_check
      _
    $region27: #{tpu_custom_call.1} parent=1 // pred_check_branch
      %108 = sbr.rel (0) target = $region29
    $region28: #{tpu_custom_call.1} parent=1 // pred_region
      %110 = dma.done [#allocation4], 256
    $region29: #{tpu_custom_call.1} parent=1 // pred_fallthru
      _
    %111 = vsyncpa [#allocation3], 1
    %112 = vsyncpa [#allocation6], 1
    %113 = vsyncpa [#allocation4], 1

</llo_original>
